<compile_context>
chip_gen: v7x
topology: tpu7x:2x2x1
jax: 0.10.0
libtpu: 0.0.40
codegen_flags: <defaults>
</compile_context>

<pallas_src>
import jax
import jax.numpy as jnp
from jax.experimental import pallas as pl
from jax.experimental.pallas import tpu as pltpu

LANE = 128     # feature dims padded to a multiple of this (lane width)
SUBLANE = 8    # row tiles are multiples of this (sublane width)


def _round_up(x, m):
    return ((x + m - 1) // m) * m


# Activations of the reference module (PyTorch defaults: LeakyReLU slope 0.01).
_ACTIVATIONS = {
    "relu": lambda h: jnp.maximum(h, 0.0),
    "leaky_relu": lambda h: jnp.where(h >= 0.0, h, 0.01 * h),
    "tanh": jnp.tanh,
    "sigmoid": jax.nn.sigmoid,
    "gelu": jax.nn.gelu,
}

# Dimension-semantics constants (enum where available, string fallback).
_PAR = getattr(pltpu, "PARALLEL", "parallel")
_ARB = getattr(pltpu, "ARBITRARY", "arbitrary")
_CORE_PAR = getattr(pltpu, "CORE_PARALLEL", None)


# --------------------------------------------------------------------------- #
# Hardware / capability detection (queried once, safe fallbacks)
# --------------------------------------------------------------------------- #
_HW = None


def _tpu_hw():
    """(tensorcores_per_chip, vmem_capacity_bytes, has_bf16_vpu)."""
    global _HW
    if _HW is not None:
        return _HW
    num_cores, vmem_cap, bf16_vpu = 1, 64 << 20, False   # conservative defaults
    try:
        info = pltpu.get_tpu_info()
        cap = getattr(info, "vmem_capacity_bytes", None)
        if cap:
            vmem_cap = int(cap)
        for attr in ("num_cores", "num_tensorcores", "tensorcores_per_chip",
                     "cores_per_chip"):
            v = getattr(info, attr, None)
            if v:
                num_cores = int(v)
                break
    except Exception:
        pass
    try:
        kind = jax.devices()[0].device_kind.lower()
        # v2-v5 have no bf16 VPU/EUP; v6e and later do.
        bf16_vpu = not any(t in kind for t in ("v2", "v3", "v4", "v5"))
        if "v7" in kind or "7x" in kind:
            num_cores = max(num_cores, 2)   # v7x: 2 TensorCores per chip
    except Exception:
        pass
    _HW = (num_cores, vmem_cap, bf16_vpu)
    return _HW


_BUFFERED_OK = None


def _buffered_supported():
    """One-time probe: does this JAX support pipeline_mode=pl.Buffered(...)?"""
    global _BUFFERED_OK
    if _BUFFERED_OK is not None:
        return _BUFFERED_OK
    try:
        def k(a_ref, w_ref, o_ref):
            o_ref[...] = a_ref[...] + w_ref[...]

        probe = pl.pallas_call(
            k,
            out_shape=jax.ShapeDtypeStruct((32, 128), jnp.float32),
            grid_spec=pltpu.PrefetchScalarGridSpec(
                num_scalar_prefetch=0,
                grid=(4,),
                in_specs=[
                    pl.BlockSpec((8, 128), lambda i: (i, 0),
                                 pipeline_mode=pl.Buffered(3)),
                    pl.BlockSpec((8, 128), lambda i: (0, 0),
                                 pipeline_mode=pl.Buffered(1)),
                ],
                out_specs=pl.BlockSpec((8, 128), lambda i: (i, 0)),
            ),
        )
        jax.block_until_ready(probe(jnp.zeros((32, 128), jnp.float32),
                                    jnp.zeros((8, 128), jnp.float32)))
        _BUFFERED_OK = True
    except Exception:
        _BUFFERED_OK = False
    return _BUFFERED_OK


def _bspec(shape, index_map, buffers=None):
    if buffers is None:
        return pl.BlockSpec(shape, index_map)
    return pl.BlockSpec(shape, index_map, pipeline_mode=pl.Buffered(buffers))


# --------------------------------------------------------------------------- #
# Parameter padding & tiling choices
# --------------------------------------------------------------------------- #
def _pad_params(params, pad_first_k):
    """Zero-pad (W, b) so output dims (and K for layers > 0, or every layer when
    pad_first_k) are multiples of LANE; W -> bf16, b -> f32 (1, d_out_p).
    Zero padding is semantics-preserving: padded K rows of the NEXT layer's
    weight are zero, annihilating activation(0) in padded columns."""
    padded = []
    for li, (w, b) in enumerate(params):
        d_in, d_out = int(w.shape[0]), int(w.shape[1])
        d_in_p = _round_up(d_in, LANE) if (li > 0 or pad_first_k) else d_in
        d_out_p = _round_up(d_out, LANE)
        w_p = jnp.zeros((d_in_p, d_out_p), jnp.bfloat16)
        w_p = w_p.at[:d_in, :d_out].set(w.astype(jnp.bfloat16))
        b_p = jnp.zeros((1, d_out_p), jnp.float32)
        b_p = b_p.at[:, :d_out].set(jnp.reshape(b, (1, -1)).astype(jnp.float32))
        padded.append((w_p, b_p))
    return padded


def _select_row_tiling(B, block_rows, num_cores):
    """Pick (tm, grid_m, B_pad).  Never split a batch that fits one tile on
    single-TC chips; on multi-TC chips make grid_m a multiple of num_cores."""
    block_rows = max(SUBLANE, _round_up(block_rows, SUBLANE))
    b8 = _round_up(B, SUBLANE)
    if b8 <= block_rows:
        if num_cores > 1 and b8 >= num_cores * SUBLANE:
            grid_m = num_cores
            tm = _round_up(-(-b8 // num_cores), SUBLANE)
        else:
            grid_m = 1
            tm = b8
    else:
        tm = block_rows                       # default 512: MXU-aligned (x256)
        grid_m = -(-b8 // tm)
        if num_cores > 1:
            grid_m = _round_up(grid_m, num_cores)
    return tm, grid_m, grid_m * tm


def _fused_vmem_bytes(tm, d0, x_itemsize, padded_params, out_itemsize,
                      weight_buffers, x_buffers):
    w_bytes = sum(int(w.size) * 2 + int(b.size) * 4
                  for w, b in padded_params) * weight_buffers
    x_bytes = tm * d0 * x_itemsize * x_buffers
    out_p = int(padded_params[-1][0].shape[1])
    out_bytes = tm * out_p * out_itemsize * 2
    max_din = max(int(w.shape[0]) for w, _ in padded_params)
    max_dout = max(int(w.shape[1]) for w, _ in padded_params)
    live = tm * max_dout * 4 + tm * max_din * 2   # f32 acc + bf16 h coexist
    internal = 2 << 20                            # Mosaic internal scratch margin
    return w_bytes + x_bytes + out_bytes + live + internal


# --------------------------------------------------------------------------- #
# Fused path: all layers resident in VMEM, one kernel over the batch grid
# --------------------------------------------------------------------------- #
def _make_fused_kernel(num_layers, activation, bf16_epilogue):
    act = _ACTIVATIONS[activation]

    def kernel(*refs):
        x_ref, o_ref = refs[0], refs[-1]
        prm = refs[1:-1]                              # (w0, b0, w1, b1, ...)
        h = x_ref[...].astype(jnp.bfloat16)           # in-kernel f32 -> bf16
        for li in range(num_layers):
            w = prm[2 * li][...]                      # bf16 (K, N_pad)
            b = prm[2 * li + 1][...]                  # f32  (1, N_pad)
            acc = jnp.dot(h, w, preferred_element_type=jnp.float32) + b
            if li < num_layers - 1:
                if bf16_epilogue:                     # bf16 VPU/EUP (v6e/v7x)
                    h = act(acc.astype(jnp.bfloat16))
                else:                                 # f32 epilogue (v5e)
                    h = act(acc).astype(jnp.bfloat16)
            else:
                o_ref[...] = acc.astype(o_ref.dtype)

    return kernel


def _mlp_fused(x, padded_params, *, activation, bf16_epilogue, out_dtype,
               tm, grid_m, B_pad, vmem_limit, m_sem, weight_buffers, x_buffers):
    B, d0 = int(x.shape[0]), int(x.shape[1])
    num_layers = len(padded_params)
    out_p = int(padded_params[-1][0].shape[1])

    kernel = _make_fused_kernel(num_layers, activation, bf16_epilogue)

    in_specs = [_bspec((tm, d0), lambda i: (i, 0), x_buffers)]
    flat = []
    for w, b in padded_params:
        in_specs.append(_bspec(w.shape, lambda i: (0, 0), weight_buffers))
        in_specs.append(_bspec(b.shape, lambda i: (0, 0), weight_buffers))
        flat.extend([w, b])
    out_spec = pl.BlockSpec((tm, out_p), lambda i: (i, 0))

    flops = 2 * B_pad * sum(int(w.shape[0]) * int(w.shape[1])
                            for w, _ in padded_params)
    trans = 0
    if activation in ("tanh", "sigmoid", "gelu"):
        trans = B_pad * sum(int(w.shape[1]) for w, _ in padded_params[:-1])
    weight_bytes = sum(int(w.size) * 2 + int(b.size) * 4 for w, b in padded_params)
    bytes_accessed = (int(x.size) * x.dtype.itemsize + weight_bytes
                      + B_pad * out_p * jnp.dtype(out_dtype).itemsize)

    call = pl.pallas_call(
        kernel,
        out_shape=jax.ShapeDtypeStruct((B_pad, out_p), out_dtype),
        grid_spec=pltpu.PrefetchScalarGridSpec(
            num_scalar_prefetch=0,
            grid=(grid_m,),
            in_specs=in_specs,
            out_specs=out_spec,
        ),
        compiler_params=pltpu.CompilerParams(
            dimension_semantics=(m_sem,),
            vmem_limit_bytes=int(vmem_limit),
        ),
        cost_estimate=pl.CostEstimate(flops=int(flops), transcendentals=int(trans),
                                      bytes_accessed=int(bytes_accessed)),
    )
    return call(x, *flat)


# --------------------------------------------------------------------------- #
# Streaming path: per-layer tiled matmul + fused epilogue (large weight sets)
# --------------------------------------------------------------------------- #
def _make_layer_kernel(activation, apply_act, bf16_epilogue):
    act = _ACTIVATIONS[activation]

    def kernel(h_ref, w_ref, b_ref, o_ref, acc_ref):
        @pl.when(pl.program_id(2) == 0)
        def _():
            acc_ref[...] = jnp.zeros_like(acc_ref)

        acc_ref[...] += jnp.dot(h_ref[...], w_ref[...],
                                preferred_element_type=jnp.float32)

        @pl.when(pl.program_id(2) == pl.num_programs(2) - 1)
        def _():
            r = acc_ref[...] + b_ref[...]
            if apply_act:
                r = act(r.astype(jnp.bfloat16)) if bf16_epilogue else act(r)
            o_ref[...] = r.astype(o_ref.dtype)

    return kernel


def _divisor_tile(dim, target):
    """Largest multiple of LANE that divides `dim` (itself a multiple of LANE)
    and is <= target (so no grid block ever reads out of bounds on K/N)."""
    best = LANE
    t = LANE
    while t <= min(dim, target):
        if dim % t == 0:
            best = t
        t += LANE
    return best


def _streaming_linear(h, w_p, b_p, *, activation, apply_act, bf16_epilogue,
                      out_dtype, tm, block_cols, vmem_limit, m_sem):
    M, K = int(h.shape[0]), int(h.shape[1])
    N = int(w_p.shape[1])
    tn = _divisor_tile(N, block_cols)
    tk = _divisor_tile(K, block_cols)
    grid = (M // tm, N // tn, K // tk)

    kernel = _make_layer_kernel(activation, apply_act, bf16_epilogue)
    out_itemsize = jnp.dtype(out_dtype).itemsize
    cost = pl.CostEstimate(
        flops=2 * M * N * K,
        transcendentals=(M * N if (apply_act and activation in ("tanh", "sigmoid", "gelu")) else 0),
        bytes_accessed=M * K * h.dtype.itemsize + K * N * 2 + N * 4 + M * N * out_itemsize)

    return pl.pallas_call(
        kernel,
        out_shape=jax.ShapeDtypeStruct((M, N), out_dtype),
        grid_spec=pltpu.PrefetchScalarGridSpec(
            num_scalar_prefetch=0,
            grid=grid,
            in_specs=[pl.BlockSpec((tm, tk), lambda i, j, k: (i, k)),
                      pl.BlockSpec((tk, tn), lambda i, j, k: (k, j)),
                      pl.BlockSpec((1, tn), lambda i, j, k: (0, j))],
            out_specs=pl.BlockSpec((tm, tn), lambda i, j, k: (i, j)),
            scratch_shapes=[pltpu.VMEM((tm, tn), jnp.float32)],
        ),
        compiler_params=pltpu.CompilerParams(
            dimension_semantics=(m_sem, _PAR, _ARB),
            vmem_limit_bytes=int(vmem_limit),
        ),
        cost_estimate=cost,
    )(h, w_p, b_p)


def _mlp_streaming(x, params, *, activation, bf16_epilogue, out_dtype,
                   tm, B_pad, vmem_limit, m_sem, block_cols=512):
    B, d0 = int(x.shape[0]), int(x.shape[1])
    num_layers = len(params)
    padded = _pad_params(params, pad_first_k=True)
    d0_p = int(padded[0][0].shape[0])
    # Weights dominate HBM traffic in this regime; one bf16 pad of x is cheap here.
    h = jnp.zeros((B_pad, d0_p), jnp.bfloat16)
    h = h.at[:B, :d0].set(x.astype(jnp.bfloat16))
    for li, (w_p, b_p) in enumerate(padded):
        last = li == num_layers - 1
        h = _streaming_linear(
            h, w_p, b_p, activation=activation, apply_act=not last,
            bf16_epilogue=bf16_epilogue,
            out_dtype=(out_dtype if last else jnp.bfloat16),
            tm=tm, block_cols=block_cols, vmem_limit=vmem_limit, m_sem=m_sem)
    return h


# --------------------------------------------------------------------------- #
# Public wrapper
# --------------------------------------------------------------------------- #
def mlp_forward(x, params, *, activation="relu", block_rows=512, out_dtype=None,
                force_streaming=False):
    """MLP forward pass.

    x      : (B, input_dim) float32
    params : list of (W, b) with W: (d_in, d_out), b: (1, d_out) or (d_out,)
    """
    if activation not in _ACTIVATIONS:
        raise ValueError(f"Unsupported activation: {activation}")
    B, d0 = int(x.shape[0]), int(x.shape[1])
    out_dim = int(params[-1][0].shape[1])
    # Default keeps the module's f32 output; pass out_dtype=jnp.bfloat16 to halve
    # output HBM writeback when the consumer accepts it.
    out_dtype = jnp.dtype(x.dtype if out_dtype is None else out_dtype)

    num_cores, vmem_cap, bf16_vpu = _tpu_hw()
    # ~87.5% of physical VMEM: ~112 MiB on v5e/v6e (128 MiB), ~56 MiB on v7x (64 MiB).
    vmem_limit = max(32 << 20, int(0.875 * vmem_cap))

    tm, grid_m, B_pad = _select_row_tiling(B, block_rows, num_cores)
    if (num_cores > 1 and grid_m >= num_cores and grid_m % num_cores == 0
            and _CORE_PAR is not None):
        m_sem = _CORE_PAR       # really shard the batch axis across TensorCores
    else:
        m_sem = _PAR

    buffered_ok = _buffered_supported()
    wb_count = 1 if buffered_ok else 2
    xb_count = 3 if (buffered_ok and grid_m >= 4) else 2

    padded_fused = _pad_params(params, pad_first_k=False)
    fused_need = _fused_vmem_bytes(tm, d0, x.dtype.itemsize, padded_fused,
                                   out_dtype.itemsize, wb_count, xb_count)
    use_streaming = force_streaming or int(1.15 * fused_need) > vmem_limit

    if use_streaming:
        out_padded = _mlp_streaming(
            x, params, activation=activation, bf16_epilogue=bf16_vpu,
            out_dtype=out_dtype, tm=tm, B_pad=B_pad,
            vmem_limit=vmem_limit, m_sem=m_sem)
    else:
        out_padded = _mlp_fused(
            x, padded_fused, activation=activation, bf16_epilogue=bf16_vpu,
            out_dtype=out_dtype, tm=tm, grid_m=grid_m, B_pad=B_pad,
            vmem_limit=vmem_limit, m_sem=m_sem,
            weight_buffers=(1 if buffered_ok else None),
            x_buffers=(xb_count if (buffered_ok and xb_count > 2) else None))
    return out_padded[:B, :out_dim]


# --------------------------------------------------------------------------- #
# Reference / init / demo
# --------------------------------------------------------------------------- #
def init_mlp_params(key, input_dim, hidden_dims, output_dim):
    """Deterministic synthetic params (PyTorch-default-ish uniform init)."""
    dims = [input_dim] + list(hidden_dims) + [output_dim]
    params = []
    for i in range(len(dims) - 1):
        d_in, d_out = dims[i], dims[i + 1]
        key, kw, kb = jax.random.split(key, 3)
        bound = 1.0 / (d_in ** 0.5)
        w = jax.random.uniform(kw, (d_in, d_out), jnp.float32, -bound, bound)
        b = jax.random.uniform(kb, (1, d_out), jnp.float32, -bound, bound)
        params.append((w, b))
    return params


def mlp_reference(x, params, activation="relu"):
    """Plain-JAX f32 reference for correctness checking."""
    act = _ACTIVATIONS[activation]
    h = x
    n = len(params)
    for li, (w, b) in enumerate(params):
        h = h @ w + jnp.reshape(b, (1, -1))
        if li < n - 1:
            h = act(h)
    return h


if __name__ == "__main__":
    # Small shapes consistent with MLP(input_dim=32, hidden_dims=(64, 64), output_dim=16)
    batch = 8
    input_dim = 32
    hidden_dims = (64, 64)
    output_dim = 16

    key = jax.random.PRNGKey(0)
    key, kx = jax.random.split(key)
    x = jax.random.normal(kx, (batch, input_dim), jnp.float32)
    params = init_mlp_params(key, input_dim, hidden_dims, output_dim)

    # TODO(synk): train-mode Dropout and BatchNorm1d (both disabled in the
    # reference module's default config) are not implemented in the kernel.

    ref = mlp_reference(x, params)

    # Fused (all-layers-resident) path, jitted once.
    fwd = jax.jit(lambda xx, pp: mlp_forward(xx, pp, activation="relu"))
    out = jax.block_until_ready(fwd(x, params))
    assert out.shape == (batch, output_dim)
    # bf16 MXU inputs with f32 accumulation -> looser tolerance vs f32 reference.
    assert jnp.allclose(out, ref, atol=5e-2, rtol=5e-2), "fused path mismatch"

    # Also exercise the streaming (large-weights) fallback path on the same problem.
    fwd_s = jax.jit(lambda xx, pp: mlp_forward(xx, pp, activation="relu",
                                               force_streaming=True))
    out_s = jax.block_until_ready(fwd_s(x, params))
    assert out_s.shape == (batch, output_dim)
    assert jnp.allclose(out_s, ref, atol=5e-2, rtol=5e-2), "streaming path mismatch"

    print("KERNEL_OK")
</pallas_src>

<mosaic_0001>
module attributes {stable_mosaic.version = 11 : i64} {
  func.func @kernel(%arg0: i32, %arg1: memref<8x32xf32, #tpu.memory_space<vmem>>, %arg2: memref<32x128xbf16, #tpu.memory_space<vmem>>, %arg3: memref<1x128xf32, #tpu.memory_space<vmem>>, %arg4: memref<128x128xbf16, #tpu.memory_space<vmem>>, %arg5: memref<1x128xf32, #tpu.memory_space<vmem>>, %arg6: memref<128x128xbf16, #tpu.memory_space<vmem>>, %arg7: memref<1x128xf32, #tpu.memory_space<vmem>>, %arg8: memref<8x128xf32, #tpu.memory_space<vmem>>) attributes {dimension_semantics = [#tpu.dimension_semantics<parallel>], iteration_bounds = array<i64: 1>, scalar_prefetch = 0 : i64, scratch_operands = 0 : i64, tpu.core_type = #tpu.core_type<tc>, window_params = [{transform_indices = @transform_0, window_bounds = array<i64: 8, 32>}, {pipeline_mode = #tpu.pipeline_mode<synchronous>, transform_indices = @transform_1, window_bounds = array<i64: 32, 128>}, {pipeline_mode = #tpu.pipeline_mode<synchronous>, transform_indices = @transform_2, window_bounds = array<i64: 1, 128>}, {pipeline_mode = #tpu.pipeline_mode<synchronous>, transform_indices = @transform_3, window_bounds = array<i64: 128, 128>}, {pipeline_mode = #tpu.pipeline_mode<synchronous>, transform_indices = @transform_4, window_bounds = array<i64: 1, 128>}, {pipeline_mode = #tpu.pipeline_mode<synchronous>, transform_indices = @transform_5, window_bounds = array<i64: 128, 128>}, {pipeline_mode = #tpu.pipeline_mode<synchronous>, transform_indices = @transform_6, window_bounds = array<i64: 1, 128>}, {transform_indices = @transform_7, window_bounds = array<i64: 8, 128>}]} {
    %c0 = arith.constant 0 : index
    %c0_0 = arith.constant 0 : index
    %0 = vector.load %arg1[%c0, %c0_0] : memref<8x32xf32, #tpu.memory_space<vmem>>, vector<8x32xf32>
    %1 = arith.truncf %0 : vector<8x32xf32> to vector<8x32xbf16>
    %c0_1 = arith.constant 0 : index
    %c0_2 = arith.constant 0 : index
    %2 = vector.load %arg2[%c0_1, %c0_2] : memref<32x128xbf16, #tpu.memory_space<vmem>>, vector<32x128xbf16>
    %c0_3 = arith.constant 0 : index
    %c0_4 = arith.constant 0 : index
    %3 = vector.load %arg3[%c0_3, %c0_4] : memref<1x128xf32, #tpu.memory_space<vmem>>, vector<1x128xf32>
    %cst = arith.constant dense<0.000000e+00> : vector<8x128xf32>
    %4 = tpu.matmul %1, %2, %cst {dimension_numbers = #tpu.dot_dimension_numbers<[1], [0], [0], [1], [0, 0, 1, 1], [], []>} : vector<8x32xbf16>, vector<32x128xbf16>, vector<8x128xf32> -> vector<8x128xf32>
    %5 = vector.broadcast %3 : vector<1x128xf32> to vector<8x128xf32>
    %6 = arith.addf %4, %5 : vector<8x128xf32>
    %7 = arith.truncf %6 : vector<8x128xf32> to vector<8x128xbf16>
    %cst_5 = arith.constant 0.000000e+00 : bf16
    %8 = vector.broadcast %cst_5 : bf16 to vector<8x128xbf16>
    %9 = arith.maximumf %7, %8 : vector<8x128xbf16>
    %c0_6 = arith.constant 0 : index
    %c0_7 = arith.constant 0 : index
    %10 = vector.load %arg4[%c0_6, %c0_7] : memref<128x128xbf16, #tpu.memory_space<vmem>>, vector<128x128xbf16>
    %c0_8 = arith.constant 0 : index
    %c0_9 = arith.constant 0 : index
    %11 = vector.load %arg5[%c0_8, %c0_9] : memref<1x128xf32, #tpu.memory_space<vmem>>, vector<1x128xf32>
    %cst_10 = arith.constant dense<0.000000e+00> : vector<8x128xf32>
    %12 = tpu.matmul %9, %10, %cst_10 {dimension_numbers = #tpu.dot_dimension_numbers<[1], [0], [0], [1], [0, 0, 1, 1], [], []>} : vector<8x128xbf16>, vector<128x128xbf16>, vector<8x128xf32> -> vector<8x128xf32>
    %13 = vector.broadcast %11 : vector<1x128xf32> to vector<8x128xf32>
    %14 = arith.addf %12, %13 : vector<8x128xf32>
    %15 = arith.truncf %14 : vector<8x128xf32> to vector<8x128xbf16>
    %cst_11 = arith.constant 0.000000e+00 : bf16
    %16 = vector.broadcast %cst_11 : bf16 to vector<8x128xbf16>
    %17 = arith.maximumf %15, %16 : vector<8x128xbf16>
    %c0_12 = arith.constant 0 : index
    %c0_13 = arith.constant 0 : index
    %18 = vector.load %arg6[%c0_12, %c0_13] : memref<128x128xbf16, #tpu.memory_space<vmem>>, vector<128x128xbf16>
    %c0_14 = arith.constant 0 : index
    %c0_15 = arith.constant 0 : index
    %19 = vector.load %arg7[%c0_14, %c0_15] : memref<1x128xf32, #tpu.memory_space<vmem>>, vector<1x128xf32>
    %cst_16 = arith.constant dense<0.000000e+00> : vector<8x128xf32>
    %20 = tpu.matmul %17, %18, %cst_16 {dimension_numbers = #tpu.dot_dimension_numbers<[1], [0], [0], [1], [0, 0, 1, 1], [], []>} : vector<8x128xbf16>, vector<128x128xbf16>, vector<8x128xf32> -> vector<8x128xf32>
    %21 = vector.broadcast %19 : vector<1x128xf32> to vector<8x128xf32>
    %22 = arith.addf %20, %21 : vector<8x128xf32>
    %c0_17 = arith.constant 0 : index
    %c0_18 = arith.constant 0 : index
    %23 = vector.load %arg8[%c0_17, %c0_18] : memref<8x128xf32, #tpu.memory_space<vmem>>, vector<8x128xf32>
    tpu.vector_store %arg8[%c0_17, %c0_18], %22 {strides = array<i32>} : memref<8x128xf32, #tpu.memory_space<vmem>>, vector<8x128xf32>,
    return
  }
  func.func @transform_0(%arg0: i32) -> (i32, i32) {
    %c0_i32 = arith.constant 0 : i32
    %c0_i32_0 = arith.constant 0 : i32
    return %arg0, %c0_i32 : i32, i32
  }
  func.func @transform_1(%arg0: i32) -> (i32, i32) {
    %c0_i32 = arith.constant 0 : i32
    %c0_i32_0 = arith.constant 0 : i32
    %c0_i32_1 = arith.constant 0 : i32
    return %c0_i32, %c0_i32_0 : i32, i32
  }
  func.func @transform_2(%arg0: i32) -> (i32, i32) {
    %c0_i32 = arith.constant 0 : i32
    %c0_i32_0 = arith.constant 0 : i32
    %c0_i32_1 = arith.constant 0 : i32
    return %c0_i32, %c0_i32_0 : i32, i32
  }
  func.func @transform_3(%arg0: i32) -> (i32, i32) {
    %c0_i32 = arith.constant 0 : i32
    %c0_i32_0 = arith.constant 0 : i32
    %c0_i32_1 = arith.constant 0 : i32
    return %c0_i32, %c0_i32_0 : i32, i32
  }
  func.func @transform_4(%arg0: i32) -> (i32, i32) {
    %c0_i32 = arith.constant 0 : i32
    %c0_i32_0 = arith.constant 0 : i32
    %c0_i32_1 = arith.constant 0 : i32
    return %c0_i32, %c0_i32_0 : i32, i32
  }
  func.func @transform_5(%arg0: i32) -> (i32, i32) {
    %c0_i32 = arith.constant 0 : i32
    %c0_i32_0 = arith.constant 0 : i32
    %c0_i32_1 = arith.constant 0 : i32
    return %c0_i32, %c0_i32_0 : i32, i32
  }
  func.func @transform_6(%arg0: i32) -> (i32, i32) {
    %c0_i32 = arith.constant 0 : i32
    %c0_i32_0 = arith.constant 0 : i32
    %c0_i32_1 = arith.constant 0 : i32
    return %c0_i32, %c0_i32_0 : i32, i32
  }
  func.func @transform_7(%arg0: i32) -> (i32, i32) {
    %c0_i32 = arith.constant 0 : i32
    %c0_i32_0 = arith.constant 0 : i32
    return %arg0, %c0_i32 : i32, i32
  }
}

</mosaic_0001>

<llo_original>
// kernel: _lambda_.1
$region0: #{_lambda_.1}
  #allocation0 [shape = 'u32[]', space=smem, size = 0x4, offset = 0x4, fixed_abs, tag = 'smem constant byte address 0x4 - core index']
  #allocation1 [shape = 'u32[144,128]{1,0:T(1,128)}', space=vmem, size = 0x12000, scoped, tag = 'internal scratch']
  %s0 = inlined_call_operand.vmem [shape: f32[8,32], index: 0, kind: input, shape index: {}]
  %s1 = inlined_call_operand.vmem [shape: bf16[32,128], index: 1, kind: input, shape index: {}]
  %s2 = inlined_call_operand.vmem [shape: f32[1,128], index: 2, kind: input, shape index: {}]
  %s3 = inlined_call_operand.vmem [shape: bf16[128,128], index: 3, kind: input, shape index: {}]
  %s4 = inlined_call_operand.vmem [shape: f32[1,128], index: 4, kind: input, shape index: {}]
  %s5 = inlined_call_operand.vmem [shape: bf16[128,128], index: 5, kind: input, shape index: {}]
  %s6 = inlined_call_operand.vmem [shape: f32[1,128], index: 6, kind: input, shape index: {}]
  %s7 = inlined_call_operand.hbm [shape: f32[8,128], index: 7, kind: output, shape index: {}]
  %s8 = sld [smem:[#allocation0]]
  $region38: #{_lambda_.1} parent=0
    _
  %s10 = ssub.s32 1, %s8
  %s11 = scalar_select 0, %s10, %s8
  $region1: #{_lambda_.1} parent=0
    #allocation2 [shape = 'u8[4096]{0}', space=vmem, size = 0x1000, scoped, tag = 'output window, operand 0, single buffered']
    #allocation3 [shape = 's32[1]{0}', space=sflag, size = 0x4, scoped, tag = 'scoped memory for _lambda_.1']
    %12 = vsyncpa [#allocation3], 0
    // Predicated region
    $region2: #{_lambda_.1} parent=1 // pred_check
      _
    $region3: #{_lambda_.1} parent=1 // pred_check_branch
      %14 = sbr.rel (0) target = $region5
    $region4: #{_lambda_.1} parent=1 // pred_region
      _
    $region5: #{_lambda_.1} parent=1 // pred_fallthru
      _
    // Predicated region
    $region6: #{_lambda_.1} parent=1 // pred_check
      _
    $region7: #{_lambda_.1} parent=1 // pred_check_branch
      %16 = sbr.rel (0) target = $region9
    $region8: #{_lambda_.1} parent=1 // pred_region
      _
    $region9: #{_lambda_.1} parent=1 // pred_fallthru
      _
    // Predicated region
    $region10: #{_lambda_.1} parent=1 // pred_check
      _
    $region11: #{_lambda_.1} parent=1 // pred_check_branch
      %18 = sbr.rel (0) target = $region13
    $region12: #{_lambda_.1} parent=1 // pred_region
      _
    $region13: #{_lambda_.1} parent=1 // pred_fallthru
      _
    // Predicated region
    $region14: #{_lambda_.1} parent=1 // pred_check
      _
    $region15: #{_lambda_.1} parent=1 // pred_check_branch
      %20 = sbr.rel (0) target = $region17
    $region16: #{_lambda_.1} parent=1 // pred_region
      _
    $region17: #{_lambda_.1} parent=1 // pred_fallthru
      _
    // Predicated region
    $region18: #{_lambda_.1} parent=1 // pred_check
      _
    $region19: #{_lambda_.1} parent=1 // pred_check_branch
      %22 = sbr.rel (0) target = $region21
    $region20: #{_lambda_.1} parent=1 // pred_region
      _
    $region21: #{_lambda_.1} parent=1 // pred_fallthru
      _
    // Predicated region
    $region22: #{_lambda_.1} parent=1 // pred_check
      _
    $region23: #{_lambda_.1} parent=1 // pred_check_branch
      %24 = sbr.rel (0) target = $region25
    $region24: #{_lambda_.1} parent=1 // pred_region
      _
    $region25: #{_lambda_.1} parent=1 // pred_fallthru
      _
    // Predicated region
    $region26: #{_lambda_.1} parent=1 // pred_check
      _
    $region27: #{_lambda_.1} parent=1 // pred_check_branch
      %26 = sbr.rel (0) target = $region29
    $region28: #{_lambda_.1} parent=1 // pred_region
      _
    $region29: #{_lambda_.1} parent=1 // pred_fallthru
      _
    %v28 = vld [vmem:[%s0] sm:$0xff]
    %v29 = vpack.c.bf16 %v28, %v28
    %v30 = vld [vmem:[%s1] sm:$0xf]
    %v31 = vld [vmem:[%s1 + $0x4] sm:$0xf]
    %v32 = vld [vmem:[%s1 + $0x8] sm:$0xf]
    %v33 = vld [vmem:[%s1 + $0xc] sm:$0xf]
    %v34 = vld [vmem:[%s2] sm:$0x1]
    %v36 = vlaneseq
    %v37 = vshrl.u32 %v36, 7
    %v38 = vsub.s32 0, %v37
    %v39 = vrot.slane %v34, %v38
    %v45 = vunpack.c.l.b16 %v30
    %v46 = vunpack.c.l.b16 %v31
    %v47 = vunpack.c.l.b16 %v32
    %v48 = vunpack.c.l.b16 %v33
    %v49 = vpack.c.b16 %v46, %v45
    %v50 = vpack.c.b16 %v48, %v47
    %vm53 = vcmask 261120
    %v55 = vsel %vm53, %v29, 0
    %57 = vmatprep.subr.bf16.mxu0 0
    %58 = vmatpush1.bf16.msra.mxu0 %v49
    %59 = vmatprep.subr.bf16.mxu0 0
    %60 = vmatpush1.bf16.msra.mxu0 %v50
    %61 = vmatprep.subr.bf16.mxu0 0
    %62 = vmatpush1.bf16.msra.mxu0 0
    %63 = vmatprep.subr.bf16.mxu0 0
    %64 = vmatpush1.bf16.msra.mxu0 0
    %65 = vmatprep.subr.bf16.mxu0 0
    %66 = vmatpush1.bf16.msra.mxu0 0
    %67 = vmatprep.subr.bf16.mxu0 0
    %68 = vmatpush1.bf16.msra.mxu0 0
    %69 = vmatprep.subr.bf16.mxu0 0
    %70 = vmatpush1.bf16.msra.mxu0 0
    %71 = vmatprep.subr.bf16.mxu0 0
    %72 = vmatpush1.bf16.msra.mxu0 0
    %73 = vmatprep.subr.bf16.mxu0 0
    %74 = vmatpush1.bf16.msra.mxu0 0
    %75 = vmatprep.subr.bf16.mxu0 0
    %76 = vmatpush1.bf16.msra.mxu0 0
    %77 = vmatprep.subr.bf16.mxu0 0
    %78 = vmatpush1.bf16.msra.mxu0 0
    %79 = vmatprep.subr.bf16.mxu0 0
    %80 = vmatpush1.bf16.msra.mxu0 0
    %81 = vmatprep.subr.bf16.mxu0 0
    %82 = vmatpush1.bf16.msra.mxu0 0
    %83 = vmatprep.subr.bf16.mxu0 0
    %84 = vmatpush1.bf16.msra.mxu0 0
    %85 = vmatprep.subr.bf16.mxu0 0
    %86 = vmatpush1.bf16.msra.mxu0 0
    %87 = vmatprep.subr.bf16.mxu0 0
    %88 = vmatpush1.bf16.msra.mxu0 0
    %89 = vmatprep.mubr.bf16.mxu0 0
    %90 = vmatmul.mubr.bf16.gmra.mrb[0].mxu0 %v55
    %v91 = vpop.f32.mrb[0].mxu0
    %v92 = vadd.f32 %v39, %v91
    %v93 = vpop.f32.mrb[0].mxu0
    %v94 = vpop.f32.mrb[0].mxu0
    %v95 = vpop.f32.mrb[0].mxu0
    %96 = vdwg.mxu0
    %v97 = vpack.c.bf16 %v92, %v92
    %v98 = vmax.bf16 %v97, 0
    %v99 = vld [vmem:[%s3] sm:$0xf]
    %v100 = vld [vmem:[%s3 + $0x4] sm:$0xf]
    %v101 = vld [vmem:[%s3 + $0x8] sm:$0xf]
    %v102 = vld [vmem:[%s3 + $0xc] sm:$0xf]
    %v103 = vld [vmem:[%s3 + $0x10] sm:$0xf]
    %v104 = vld [vmem:[%s3 + $0x14] sm:$0xf]
    %v105 = vld [vmem:[%s3 + $0x18] sm:$0xf]
    %v106 = vld [vmem:[%s3 + $0x1c] sm:$0xf]
    %v107 = vld [vmem:[%s3 + $0x20] sm:$0xf]
    %v108 = vld [vmem:[%s3 + $0x24] sm:$0xf]
    %v109 = vld [vmem:[%s3 + $0x28] sm:$0xf]
    %v110 = vld [vmem:[%s3 + $0x2c] sm:$0xf]
    %v111 = vld [vmem:[%s3 + $0x30] sm:$0xf]
    %v112 = vld [vmem:[%s3 + $0x34] sm:$0xf]
    %v113 = vld [vmem:[%s3 + $0x38] sm:$0xf]
    %v114 = vld [vmem:[%s3 + $0x3c] sm:$0xf]
    %v115 = vld [vmem:[%s4] sm:$0x1]
    %v117 = vlaneseq
    %v118 = vshrl.u32 %v117, 7
    %v119 = vsub.s32 0, %v118
    %v120 = vrot.slane %v115, %v119
    %v138 = vunpack.c.l.b16 %v99
    %v139 = vunpack.c.l.b16 %v100
    %v140 = vunpack.c.l.b16 %v101
    %v141 = vunpack.c.l.b16 %v102
    %v142 = vunpack.c.l.b16 %v103
    %v143 = vunpack.c.l.b16 %v104
    %v144 = vunpack.c.l.b16 %v105
    %v145 = vunpack.c.l.b16 %v106
    %v146 = vunpack.c.l.b16 %v107
    %v147 = vunpack.c.l.b16 %v108
    %v148 = vunpack.c.l.b16 %v109
    %v149 = vunpack.c.l.b16 %v110
    %v150 = vunpack.c.l.b16 %v111
    %v151 = vunpack.c.l.b16 %v112
    %v152 = vunpack.c.l.b16 %v113
    %v153 = vunpack.c.l.b16 %v114
    %v154 = vpack.c.b16 %v139, %v138
    %v155 = vpack.c.b16 %v141, %v140
    %v156 = vpack.c.b16 %v143, %v142
    %v157 = vpack.c.b16 %v145, %v144
    %v158 = vpack.c.b16 %v147, %v146
    %v159 = vpack.c.b16 %v149, %v148
    %v160 = vpack.c.b16 %v151, %v150
    %v161 = vpack.c.b16 %v153, %v152
    %170 = vmatprep.subr.bf16.mxu0 0
    %171 = vmatpush1.bf16.msra.mxu0 %v154
    %172 = vmatprep.subr.bf16.mxu0 0
    %173 = vmatpush1.bf16.msra.mxu0 %v155
    %174 = vmatprep.subr.bf16.mxu0 0
    %175 = vmatpush1.bf16.msra.mxu0 %v156
    %176 = vmatprep.subr.bf16.mxu0 0
    %177 = vmatpush1.bf16.msra.mxu0 %v157
    %178 = vmatprep.subr.bf16.mxu0 0
    %179 = vmatpush1.bf16.msra.mxu0 %v158
    %180 = vmatprep.subr.bf16.mxu0 0
    %181 = vmatpush1.bf16.msra.mxu0 %v159
    %182 = vmatprep.subr.bf16.mxu0 0
    %183 = vmatpush1.bf16.msra.mxu0 %v160
    %184 = vmatprep.subr.bf16.mxu0 0
    %185 = vmatpush1.bf16.msra.mxu0 %v161
    %186 = vmatprep.subr.bf16.mxu0 0
    %187 = vmatpush1.bf16.msra.mxu0 0
    %188 = vmatprep.subr.bf16.mxu0 0
    %189 = vmatpush1.bf16.msra.mxu0 0
    %190 = vmatprep.subr.bf16.mxu0 0
    %191 = vmatpush1.bf16.msra.mxu0 0
    %192 = vmatprep.subr.bf16.mxu0 0
    %193 = vmatpush1.bf16.msra.mxu0 0
    %194 = vmatprep.subr.bf16.mxu0 0
    %195 = vmatpush1.bf16.msra.mxu0 0
    %196 = vmatprep.subr.bf16.mxu0 0
    %197 = vmatpush1.bf16.msra.mxu0 0
    %198 = vmatprep.subr.bf16.mxu0 0
    %199 = vmatpush1.bf16.msra.mxu0 0
    %200 = vmatprep.subr.bf16.mxu0 0
    %201 = vmatpush1.bf16.msra.mxu0 0
    %202 = vmatprep.mubr.bf16.mxu0 0
    %203 = vmatmul.mubr.bf16.gmra.mrb[0].mxu0 %v98
    %v204 = vpop.f32.mrb[0].mxu0
    %v205 = vadd.f32 %v120, %v204
    %v206 = vpop.f32.mrb[0].mxu0
    %v207 = vpop.f32.mrb[0].mxu0
    %v208 = vpop.f32.mrb[0].mxu0
    %209 = vdwg.mxu0
    %v210 = vpack.c.bf16 %v205, %v205
    %v211 = vmax.bf16 %v210, 0
    %v212 = vld [vmem:[%s5] sm:$0xf]
    %v213 = vld [vmem:[%s5 + $0x4] sm:$0xf]
    %v214 = vld [vmem:[%s5 + $0x8] sm:$0xf]
    %v215 = vld [vmem:[%s5 + $0xc] sm:$0xf]
    %v216 = vld [vmem:[%s5 + $0x10] sm:$0xf]
    %v217 = vld [vmem:[%s5 + $0x14] sm:$0xf]
    %v218 = vld [vmem:[%s5 + $0x18] sm:$0xf]
    %v219 = vld [vmem:[%s5 + $0x1c] sm:$0xf]
    %v220 = vld [vmem:[%s5 + $0x20] sm:$0xf]
    %v221 = vld [vmem:[%s5 + $0x24] sm:$0xf]
    %v222 = vld [vmem:[%s5 + $0x28] sm:$0xf]
    %v223 = vld [vmem:[%s5 + $0x2c] sm:$0xf]
    %v224 = vld [vmem:[%s5 + $0x30] sm:$0xf]
    %v225 = vld [vmem:[%s5 + $0x34] sm:$0xf]
    %v226 = vld [vmem:[%s5 + $0x38] sm:$0xf]
    %v227 = vld [vmem:[%s5 + $0x3c] sm:$0xf]
    %v228 = vld [vmem:[%s6] sm:$0x1]
    %v230 = vlaneseq
    %v231 = vshrl.u32 %v230, 7
    %v232 = vsub.s32 0, %v231
    %v233 = vrot.slane %v228, %v232
    %v251 = vunpack.c.l.b16 %v212
    %v252 = vunpack.c.l.b16 %v213
    %v253 = vunpack.c.l.b16 %v214
    %v254 = vunpack.c.l.b16 %v215
    %v255 = vunpack.c.l.b16 %v216
    %v256 = vunpack.c.l.b16 %v217
    %v257 = vunpack.c.l.b16 %v218
    %v258 = vunpack.c.l.b16 %v219
    %v259 = vunpack.c.l.b16 %v220
    %v260 = vunpack.c.l.b16 %v221
    %v261 = vunpack.c.l.b16 %v222
    %v262 = vunpack.c.l.b16 %v223
    %v263 = vunpack.c.l.b16 %v224
    %v264 = vunpack.c.l.b16 %v225
    %v265 = vunpack.c.l.b16 %v226
    %v266 = vunpack.c.l.b16 %v227
    %v267 = vpack.c.b16 %v252, %v251
    %v268 = vpack.c.b16 %v254, %v253
    %v269 = vpack.c.b16 %v256, %v255
    %v270 = vpack.c.b16 %v258, %v257
    %v271 = vpack.c.b16 %v260, %v259
    %v272 = vpack.c.b16 %v262, %v261
    %v273 = vpack.c.b16 %v264, %v263
    %v274 = vpack.c.b16 %v266, %v265
    %283 = vmatprep.subr.bf16.mxu0 0
    %284 = vmatpush1.bf16.msra.mxu0 %v267
    %285 = vmatprep.subr.bf16.mxu0 0
    %286 = vmatpush1.bf16.msra.mxu0 %v268
    %287 = vmatprep.subr.bf16.mxu0 0
    %288 = vmatpush1.bf16.msra.mxu0 %v269
    %289 = vmatprep.subr.bf16.mxu0 0
    %290 = vmatpush1.bf16.msra.mxu0 %v270
    %291 = vmatprep.subr.bf16.mxu0 0
    %292 = vmatpush1.bf16.msra.mxu0 %v271
    %293 = vmatprep.subr.bf16.mxu0 0
    %294 = vmatpush1.bf16.msra.mxu0 %v272
    %295 = vmatprep.subr.bf16.mxu0 0
    %296 = vmatpush1.bf16.msra.mxu0 %v273
    %297 = vmatprep.subr.bf16.mxu0 0
    %298 = vmatpush1.bf16.msra.mxu0 %v274
    %299 = vmatprep.subr.bf16.mxu0 0
    %300 = vmatpush1.bf16.msra.mxu0 0
    %301 = vmatprep.subr.bf16.mxu0 0
    %302 = vmatpush1.bf16.msra.mxu0 0
    %303 = vmatprep.subr.bf16.mxu0 0
    %304 = vmatpush1.bf16.msra.mxu0 0
    %305 = vmatprep.subr.bf16.mxu0 0
    %306 = vmatpush1.bf16.msra.mxu0 0
    %307 = vmatprep.subr.bf16.mxu0 0
    %308 = vmatpush1.bf16.msra.mxu0 0
    %309 = vmatprep.subr.bf16.mxu0 0
    %310 = vmatpush1.bf16.msra.mxu0 0
    %311 = vmatprep.subr.bf16.mxu0 0
    %312 = vmatpush1.bf16.msra.mxu0 0
    %313 = vmatprep.subr.bf16.mxu0 0
    %314 = vmatpush1.bf16.msra.mxu0 0
    %315 = vmatprep.mubr.bf16.mxu0 0
    %316 = vmatmul.mubr.bf16.gmra.mrb[0].mxu0 %v211
    %v317 = vpop.f32.mrb[0].mxu0
    %v318 = vadd.f32 %v233, %v317
    %v319 = vpop.f32.mrb[0].mxu0
    %v320 = vpop.f32.mrb[0].mxu0
    %v321 = vpop.f32.mrb[0].mxu0
    %322 = vdwg.mxu0
    %323 = vst [vmem:[#allocation2] sm:$0xff] %v318
    // Predicated region
    $region30: #{_lambda_.1} parent=1 // pred_check
      _
    $region31: #{_lambda_.1} parent=1 // pred_check_branch
      %325 = sbr.rel (0) target = $region33
    $region32: #{_lambda_.1} parent=1 // pred_region
      %s327 = ssub.s32 128, 128
      %328 = vsyncadd [#allocation3], %s327
      %s330 = sshll.u32 [#allocation2], 4
      %s331 = int_to_ptr.vmem [resolvable:$true] %s330
      %333 = dma.vmem_to_hbm [thread:$0]  %s331, 128, %s7, [#allocation3]
    $region33: #{_lambda_.1} parent=1 // pred_fallthru
      _
    // Predicated region
    $region34: #{_lambda_.1} parent=1 // pred_check
      _
    $region35: #{_lambda_.1} parent=1 // pred_check_branch
      %335 = sbr.rel (0) target = $region37
    $region36: #{_lambda_.1} parent=1 // pred_region
      %336 = dma.done [#allocation3], 128
    $region37: #{_lambda_.1} parent=1 // pred_fallthru
      _
    %337 = vsyncpa [#allocation3], 1

</llo_original>
